<compile_context>
chip_gen: v7x
topology: tpu7x:2x2x1
jax: 0.10.0
libtpu: 0.0.40
codegen_flags: <defaults>
</compile_context>

<pallas_src>
import math
from functools import partial

import jax
import jax.numpy as jnp
from jax.experimental import pallas as pl
from jax.experimental.pallas import tpu as pltpu


def _round_up(x, m):
    return ((x + m - 1) // m) * m


def _critic_kernel(n_layers, x_ref, *refs):
    """Fused Critic MLP kernel.

    refs = (W1, b1, ..., W_{n-1}, b_{n-1}, w_last_row, b_last, out_ref)
      W_i:        (in_i, out_i)   hidden-layer weights ((in, out) = nn.Linear.T)
      b_i:        (1, out_i)
      w_last_row: (1, h_last)     final layer weight as a row (out_dim == 1)
      b_last:     (1, 1)
      out_ref:    (1, tm)         lane-dense output row for this batch tile
    """
    out_ref = refs[-1]
    p = refs[:-1]

    h = x_ref[...].astype(jnp.float32)            # (tm, state_dim + action_dim)

    # Hidden layers: MXU dot with f32 accumulation, bias + ReLU on the VPU.
    for layer in range(n_layers - 1):
        w_ref = p[2 * layer]
        b_ref = p[2 * layer + 1]
        h = (jnp.dot(h, w_ref[...].astype(jnp.float32),
                     preferred_element_type=jnp.float32)
             + b_ref[...].astype(jnp.float32))
        h = jnp.maximum(h, 0.0)

    # Final layer (out_dim = 1): VPU multiply + cross-lane sum instead of an N=1
    # MXU push; result is a lane-dense (1, tm) row -> unmasked output stores.
    w_row = p[2 * (n_layers - 1)][...].astype(jnp.float32)    # (1, h_last)
    b_last = p[2 * n_layers - 1][...].astype(jnp.float32)     # (1, 1)
    q = jnp.sum(h * w_row, axis=-1)                           # (tm,)
    out_ref[...] = (q.reshape(1, h.shape[0]) + b_last).astype(out_ref.dtype)


def critic_forward(state, action, params, *, tm=None):
    """Critic forward pass as a single fused Pallas kernel.

    state:  (B, state_dim)  float32
    action: (B, action_dim) float32
    params: list of (W, b); W: (in, out) (transpose of nn.Linear), b: (1, out).
            First W has in = state_dim + action_dim; last W has out = 1.
    Returns (B, 1) float32.
    """
    batch, state_dim = state.shape
    _, action_dim = action.shape
    n_layers = len(params)
    in_dim = state_dim + action_dim

    # Concat once in the wrapper (tiny array, 96 B/row here) so layer 1 is one
    # contiguous-input MXU dot instead of two tiny-K dots.
    x = jnp.concatenate([state, action], axis=1).astype(jnp.float32)

    flat_args = [x]
    for w, b in params[:-1]:
        flat_args.extend([w, b])
    w_last, b_last = params[-1]
    flat_args.extend([w_last.reshape(1, -1), b_last.reshape(1, 1)])

    # Batch tile: fewer, fatter steps amortize the ~0.35us per-step overhead; keep
    # >= 2 steps once the batch is big enough so the "parallel" axis can shard over
    # both v7x TensorCores.  Multiples of 128 keep the lane-dense (1, tm) output
    # block legal when the grid has more than one step.
    if tm is None:
        if batch < 256:
            tm = batch
        else:
            tm = min(1024, max(128, _round_up(pl.cdiv(batch, 2), 128)))
    else:
        tm = max(1, min(tm, batch))
    if tm < batch and tm % 128 != 0:
        tm = _round_up(tm, 128)

    grid_m = pl.cdiv(batch, tm)
    batch_pad = grid_m * tm

    def _row_block(shape):
        # Batch-tiled operand: block index follows the grid step.
        return pl.BlockSpec((tm, shape[1]), lambda i: (i, 0))

    def _resident(shape):
        # Full operand, constant block index -> stays VMEM-resident across steps.
        return pl.BlockSpec(shape, lambda i: (0, 0))

    in_specs = [_row_block(x.shape)] + [_resident(a.shape) for a in flat_args[1:]]

    out_shape = jax.ShapeDtypeStruct((1, batch_pad), jnp.float32)
    out_spec = pl.BlockSpec((1, tm), lambda i: (0, i))

    # Advisory cost estimate so XLA schedules around this small custom call.
    dims = [in_dim] + [w.shape[1] for w, _ in params]
    flops = 2 * batch * sum(dims[i] * dims[i + 1] for i in range(len(dims) - 1))
    param_bytes = sum(int(a.size) * a.dtype.itemsize for a in flat_args[1:])
    bytes_accessed = int(x.size) * x.dtype.itemsize + batch * 4 + param_bytes
    cost = pl.CostEstimate(flops=flops, transcendentals=0,
                           bytes_accessed=bytes_accessed)

    out = pl.pallas_call(
        partial(_critic_kernel, n_layers),
        grid=(grid_m,),
        in_specs=in_specs,
        out_specs=out_spec,
        out_shape=out_shape,
        compiler_params=pltpu.CompilerParams(
            dimension_semantics=("parallel",),
        ),
        cost_estimate=cost,
    )(*flat_args)

    # Lane-dense (1, batch_pad) row -> (batch, 1), dropping padded rows.
    return out.reshape(-1)[:batch].reshape(batch, 1)


def init_critic_params(key, state_dim, action_dim, net_dims, dtype=jnp.float32):
    """Deterministic init mirroring nn.Linear default: U(-1/sqrt(fan_in), 1/sqrt(fan_in))."""
    dims = [state_dim + action_dim, *net_dims, 1]
    params = []
    for i in range(len(dims) - 1):
        fan_in, fan_out = dims[i], dims[i + 1]
        key, kw, kb = jax.random.split(key, 3)
        bound = 1.0 / math.sqrt(fan_in)
        w = jax.random.uniform(kw, (fan_in, fan_out), jnp.float32, -bound, bound)
        b = jax.random.uniform(kb, (1, fan_out), jnp.float32, -bound, bound)
        params.append((w.astype(dtype), b.astype(dtype)))
    return params


def critic_reference(state, action, params):
    """Pure-JAX reference mirroring the PyTorch forward."""
    h = jnp.concatenate([state, action], axis=1)
    n = len(params)
    for i, (w, b) in enumerate(params):
        h = h @ w.astype(jnp.float32) + b.astype(jnp.float32)
        if i < n - 1:
            h = jnp.maximum(h, 0.0)
    return h


if __name__ == "__main__":
    state_dim = 16
    action_dim = 8
    net_dims = [128, 128]

    key = jax.random.PRNGKey(0)
    k_state, k_action, k_params, k_state2, k_action2 = jax.random.split(key, 5)
    params = init_critic_params(k_params, state_dim, action_dim, net_dims)

    # Case 1: batch = 256 -> two 128-row grid steps (both v7x cores usable).
    batch = 256
    state = jax.random.normal(k_state, (batch, state_dim), jnp.float32)
    action = jax.random.normal(k_action, (batch, action_dim), jnp.float32)
    out = jax.block_until_ready(critic_forward(state, action, params))
    ref = critic_reference(state, action, params)
    assert out.shape == (batch, 1), out.shape
    assert jnp.allclose(out, ref, atol=2e-4, rtol=2e-4), (
        float(jnp.max(jnp.abs(out - ref))))

    # Case 2: ragged batch (batch % tm != 0) exercises partial-block padding.
    batch2 = 300
    state2 = jax.random.normal(k_state2, (batch2, state_dim), jnp.float32)
    action2 = jax.random.normal(k_action2, (batch2, action_dim), jnp.float32)
    out2 = jax.block_until_ready(critic_forward(state2, action2, params))
    ref2 = critic_reference(state2, action2, params)
    assert out2.shape == (batch2, 1), out2.shape
    assert jnp.allclose(out2, ref2, atol=2e-4, rtol=2e-4), (
        float(jnp.max(jnp.abs(out2 - ref2))))

    print("KERNEL_OK")
</pallas_src>

<mosaic_0001>
module attributes {stable_mosaic.version = 11 : i64} {
  func.func @_critic_kernel(%arg0: i32, %arg1: memref<128x24xf32, #tpu.memory_space<vmem>>, %arg2: memref<24x128xf32, #tpu.memory_space<vmem>>, %arg3: memref<1x128xf32, #tpu.memory_space<vmem>>, %arg4: memref<128x128xf32, #tpu.memory_space<vmem>>, %arg5: memref<1x128xf32, #tpu.memory_space<vmem>>, %arg6: memref<1x128xf32, #tpu.memory_space<vmem>>, %arg7: memref<1x1xf32, #tpu.memory_space<vmem>>, %arg8: memref<1x128xf32, #tpu.memory_space<vmem>>) attributes {dimension_semantics = [#tpu.dimension_semantics<parallel>], iteration_bounds = array<i64: 2>, scalar_prefetch = 0 : i64, scratch_operands = 0 : i64, tpu.core_type = #tpu.core_type<tc>, window_params = [{transform_indices = @transform_0, window_bounds = array<i64: 128, 24>}, {pipeline_mode = #tpu.pipeline_mode<synchronous>, transform_indices = @transform_1, window_bounds = array<i64: 24, 128>}, {pipeline_mode = #tpu.pipeline_mode<synchronous>, transform_indices = @transform_2, window_bounds = array<i64: 1, 128>}, {pipeline_mode = #tpu.pipeline_mode<synchronous>, transform_indices = @transform_3, window_bounds = array<i64: 128, 128>}, {pipeline_mode = #tpu.pipeline_mode<synchronous>, transform_indices = @transform_4, window_bounds = array<i64: 1, 128>}, {pipeline_mode = #tpu.pipeline_mode<synchronous>, transform_indices = @transform_5, window_bounds = array<i64: 1, 128>}, {pipeline_mode = #tpu.pipeline_mode<synchronous>, transform_indices = @transform_6, window_bounds = array<i64: 1, 1>}, {transform_indices = @transform_7, window_bounds = array<i64: 1, 128>}]} {
    %c0 = arith.constant 0 : index
    %c0_0 = arith.constant 0 : index
    %0 = vector.load %arg1[%c0, %c0_0] : memref<128x24xf32, #tpu.memory_space<vmem>>, vector<128x24xf32>
    %c0_1 = arith.constant 0 : index
    %c0_2 = arith.constant 0 : index
    %1 = vector.load %arg2[%c0_1, %c0_2] : memref<24x128xf32, #tpu.memory_space<vmem>>, vector<24x128xf32>
    %cst = arith.constant dense<0.000000e+00> : vector<128x128xf32>
    %2 = tpu.matmul %0, %1, %cst {dimension_numbers = #tpu.dot_dimension_numbers<[1], [0], [0], [1], [0, 0, 1, 1], [], []>} : vector<128x24xf32>, vector<24x128xf32>, vector<128x128xf32> -> vector<128x128xf32>
    %c0_3 = arith.constant 0 : index
    %c0_4 = arith.constant 0 : index
    %3 = vector.load %arg3[%c0_3, %c0_4] : memref<1x128xf32, #tpu.memory_space<vmem>>, vector<1x128xf32>
    %4 = vector.broadcast %3 : vector<1x128xf32> to vector<128x128xf32>
    %5 = arith.addf %2, %4 : vector<128x128xf32>
    %cst_5 = arith.constant 0.000000e+00 : f32
    %6 = vector.broadcast %cst_5 : f32 to vector<128x128xf32>
    %7 = arith.maximumf %5, %6 : vector<128x128xf32>
    %c0_6 = arith.constant 0 : index
    %c0_7 = arith.constant 0 : index
    %8 = vector.load %arg4[%c0_6, %c0_7] : memref<128x128xf32, #tpu.memory_space<vmem>>, vector<128x128xf32>
    %cst_8 = arith.constant dense<0.000000e+00> : vector<128x128xf32>
    %9 = tpu.matmul %7, %8, %cst_8 {dimension_numbers = #tpu.dot_dimension_numbers<[1], [0], [0], [1], [0, 0, 1, 1], [], []>} : vector<128x128xf32>, vector<128x128xf32>, vector<128x128xf32> -> vector<128x128xf32>
    %c0_9 = arith.constant 0 : index
    %c0_10 = arith.constant 0 : index
    %10 = vector.load %arg5[%c0_9, %c0_10] : memref<1x128xf32, #tpu.memory_space<vmem>>, vector<1x128xf32>
    %11 = vector.broadcast %10 : vector<1x128xf32> to vector<128x128xf32>
    %12 = arith.addf %9, %11 : vector<128x128xf32>
    %cst_11 = arith.constant 0.000000e+00 : f32
    %13 = vector.broadcast %cst_11 : f32 to vector<128x128xf32>
    %14 = arith.maximumf %12, %13 : vector<128x128xf32>
    %c0_12 = arith.constant 0 : index
    %c0_13 = arith.constant 0 : index
    %15 = vector.load %arg6[%c0_12, %c0_13] : memref<1x128xf32, #tpu.memory_space<vmem>>, vector<1x128xf32>
    %c0_14 = arith.constant 0 : index
    %c0_15 = arith.constant 0 : index
    %16 = vector.load %arg7[%c0_14, %c0_15] : memref<1x1xf32, #tpu.memory_space<vmem>>, vector<1x1xf32>
    %17 = vector.broadcast %15 : vector<1x128xf32> to vector<128x128xf32>
    %18 = arith.mulf %14, %17 : vector<128x128xf32>
    %cst_16 = arith.constant dense<0.000000e+00> : vector<128xf32>
    %19 = vector.multi_reduction <add>, %18, %cst_16 [1] : vector<128x128xf32> to vector<128xf32>
    %20 = vector.shape_cast %19 : vector<128xf32> to vector<1x128xf32>
    %21 = vector.broadcast %16 : vector<1x1xf32> to vector<1x128xf32>
    %22 = arith.addf %20, %21 : vector<1x128xf32>
    %c0_17 = arith.constant 0 : index
    %c0_18 = arith.constant 0 : index
    %23 = vector.load %arg8[%c0_17, %c0_18] : memref<1x128xf32, #tpu.memory_space<vmem>>, vector<1x128xf32>
    tpu.vector_store %arg8[%c0_17, %c0_18], %22 {strides = array<i32>} : memref<1x128xf32, #tpu.memory_space<vmem>>, vector<1x128xf32>,
    return
  }
  func.func @transform_0(%arg0: i32) -> (i32, i32) {
    %c0_i32 = arith.constant 0 : i32
    %c0_i32_0 = arith.constant 0 : i32
    return %arg0, %c0_i32 : i32, i32
  }
  func.func @transform_1(%arg0: i32) -> (i32, i32) {
    %c0_i32 = arith.constant 0 : i32
    %c0_i32_0 = arith.constant 0 : i32
    %c0_i32_1 = arith.constant 0 : i32
    return %c0_i32, %c0_i32_0 : i32, i32
  }
  func.func @transform_2(%arg0: i32) -> (i32, i32) {
    %c0_i32 = arith.constant 0 : i32
    %c0_i32_0 = arith.constant 0 : i32
    %c0_i32_1 = arith.constant 0 : i32
    return %c0_i32, %c0_i32_0 : i32, i32
  }
  func.func @transform_3(%arg0: i32) -> (i32, i32) {
    %c0_i32 = arith.constant 0 : i32
    %c0_i32_0 = arith.constant 0 : i32
    %c0_i32_1 = arith.constant 0 : i32
    return %c0_i32, %c0_i32_0 : i32, i32
  }
  func.func @transform_4(%arg0: i32) -> (i32, i32) {
    %c0_i32 = arith.constant 0 : i32
    %c0_i32_0 = arith.constant 0 : i32
    %c0_i32_1 = arith.constant 0 : i32
    return %c0_i32, %c0_i32_0 : i32, i32
  }
  func.func @transform_5(%arg0: i32) -> (i32, i32) {
    %c0_i32 = arith.constant 0 : i32
    %c0_i32_0 = arith.constant 0 : i32
    %c0_i32_1 = arith.constant 0 : i32
    return %c0_i32, %c0_i32_0 : i32, i32
  }
  func.func @transform_6(%arg0: i32) -> (i32, i32) {
    %c0_i32 = arith.constant 0 : i32
    %c0_i32_0 = arith.constant 0 : i32
    %c0_i32_1 = arith.constant 0 : i32
    return %c0_i32, %c0_i32_0 : i32, i32
  }
  func.func @transform_7(%arg0: i32) -> (i32, i32) {
    %c0_i32 = arith.constant 0 : i32
    %c0_i32_0 = arith.constant 0 : i32
    return %c0_i32, %arg0 : i32, i32
  }
}

</mosaic_0001>

<llo_original>
// kernel: tpu_custom_call.1
$region0: #{tpu_custom_call.1}
  #allocation0 [shape = 'u32[]', space=smem, size = 0x4, offset = 0x4, fixed_abs, tag = 'smem constant byte address 0x4 - core index']
  #allocation1 [shape = 'u32[144,128]{1,0:T(1,128)}', space=vmem, size = 0x12000, scoped, tag = 'internal scratch']
  #allocation2 [shape = 'f32[1,1]{1,0:T(1,128)S(1)}', space=vmem, size = 0x200, scoped, tag = 'scoped memory for tpu_custom_call.1']
  %s0 = inlined_call_operand.vmem [shape: f32[256,24], index: 0, kind: input, shape index: {}]
  %s1 = inlined_call_operand.vmem [shape: f32[24,128], index: 1, kind: input, shape index: {}]
  %s2 = inlined_call_operand.vmem [shape: f32[1,128], index: 2, kind: input, shape index: {}]
  %s3 = inlined_call_operand.vmem [shape: f32[128,128], index: 3, kind: input, shape index: {}]
  %s4 = inlined_call_operand.vmem [shape: f32[1,128], index: 4, kind: input, shape index: {}]
  %s5 = inlined_call_operand.vmem [shape: f32[1,128], index: 5, kind: input, shape index: {}]
  %s6 = inlined_call_operand.<no memory space> [shape: f32[1,1], index: 6, kind: input, shape index: {}]
  %s7 = inlined_call_operand.hbm [shape: f32[1,256], index: 7, kind: output, shape index: {}]
  %s8 = sld [smem:[#allocation0]]
  $region61: #{tpu_custom_call.1} parent=0
    _
  %s10 = ssub.s32 1, %s8
  %s11 = scalar_select 0, %s10, %s8
  %v12 = vstv %s6
  %13 = vst [vmem:[#allocation2] sm:$0x1] %v12
  $region1: #{tpu_custom_call.1} parent=0
    #allocation3 [shape = 'u8[1024]{0}', space=vmem, size = 0x400, scoped, tag = 'output window, operand 0']
    #allocation4 [shape = 's32[2]{0}', space=sflag, size = 0x8, scoped, tag = 'scoped memory for tpu_custom_call.1']
    %14 = vsyncpa [#allocation4], 0
    %s15 = scalar_lea.sflag [#allocation4], 1
    %16 = vsyncpa %s15, 0
    loop: start=0, step=1, limit=4
    $region2: #{tpu_custom_call.1} parent=1 // loop_pre_header
      _
    $region3: #{tpu_custom_call.1} parent=1 // loop_header
      %s18 = sphi 0, %s22
      %p19 = scmp.ge.s32.totalorder %s18, 4
      %s28 = sphi 0, %s30
      %s31 = sphi 0, %s28
      %s32 = sphi 0, %s31
      %s48 = sphi 0, %s32
      %s52 = sphi 0, %s52
      %s54 = sphi 0, %s52
      %s55 = sphi 0, %s54
      %s69 = sphi 0, %s55
      %s73 = sphi 0, %s73
      %s75 = sphi 0, %s73
      %s76 = sphi 0, %s75
      %s90 = sphi 0, %s76
      %s94 = sphi 0, %s94
      %s96 = sphi 0, %s94
      %s97 = sphi 0, %s96
      %s111 = sphi 0, %s97
      %s115 = sphi 0, %s115
      %s117 = sphi 0, %s115
      %s118 = sphi 0, %s117
      %s132 = sphi 0, %s118
      %s136 = sphi 0, %s136
      %s138 = sphi 0, %s136
      %s139 = sphi 0, %s138
      %s153 = sphi 0, %s139
      %s157 = sphi 0, %s157
      %s159 = sphi 0, %s157
      %s160 = sphi 0, %s159
      %s174 = sphi 0, %s160
      %s180 = sphi 0, %s182
      %s183 = sphi 0, %s180
      %s184 = sphi 0, %s183
      %s200 = sphi 0, %s184
    $region4: #{tpu_custom_call.1} parent=1 // loop_header_branch
      %21 = sbr.rel (%p19) target = $region8
    $region5: #{tpu_custom_call.1} parent=1 // loop_body
      %s23 = ssub.s32 %s18, 1
      %s24 = ssub.s32 %s18, 2
      %s25 = sadd.s32 %s18, 1
      %s26 = ssub.s32 %s18, %s25
      %p27 = scmp.eq.s32.totalorder %s26, 0
      %s29 = sadd.s32 %s28, 1
      %s30 = scalar_select %p27, %s28, %s29
      %p33 = pneg %p27
      %p34 = scmp.eq.s32.totalorder %s18, 1
      %p35 = por %p33, %p34
      %p36 = scmp.ne.s32.totalorder %s28, %s31
      %p37 = scmp.eq.s32.totalorder %s18, 0
      %p38 = por %p36, %p37
      %p39 = scmp.ne.s32.totalorder %s28, %s31
      %p40 = scmp.eq.s32.totalorder %s23, 1
      %p41 = por %p39, %p40
      %p42 = scmp.ne.s32.totalorder %s31, %s32
      %p43 = scmp.eq.s32.totalorder %s23, 0
      %p44 = por %p42, %p43
      %p45 = scmp.ne.s32.totalorder %s31, %s32
      %p46 = scmp.eq.s32.totalorder %s24, 1
      %p47 = por %p45, %p46
      %p49 = scmp.ne.s32.totalorder %s32, %s48
      %p50 = scmp.eq.s32.totalorder %s24, 0
      %p51 = por %p49, %p50
      %s53 = sadd.s32 %s52, 1
      %p56 = scmp.eq.s32.totalorder %s18, 1
      %p57 = scmp.ne.s32.totalorder %s52, %s54
      %p58 = scmp.eq.s32.totalorder %s18, 0
      %p59 = por %p57, %p58
      %p60 = scmp.ne.s32.totalorder %s52, %s54
      %p61 = scmp.eq.s32.totalorder %s23, 1
      %p62 = por %p60, %p61
      %p63 = scmp.ne.s32.totalorder %s54, %s55
      %p64 = scmp.eq.s32.totalorder %s23, 0
      %p65 = por %p63, %p64
      %p66 = scmp.ne.s32.totalorder %s54, %s55
      %p67 = scmp.eq.s32.totalorder %s24, 1
      %p68 = por %p66, %p67
      %p70 = scmp.ne.s32.totalorder %s55, %s69
      %p71 = scmp.eq.s32.totalorder %s24, 0
      %p72 = por %p70, %p71
      %s74 = sadd.s32 %s73, 1
      %p77 = scmp.eq.s32.totalorder %s18, 1
      %p78 = scmp.ne.s32.totalorder %s73, %s75
      %p79 = scmp.eq.s32.totalorder %s18, 0
      %p80 = por %p78, %p79
      %p81 = scmp.ne.s32.totalorder %s73, %s75
      %p82 = scmp.eq.s32.totalorder %s23, 1
      %p83 = por %p81, %p82
      %p84 = scmp.ne.s32.totalorder %s75, %s76
      %p85 = scmp.eq.s32.totalorder %s23, 0
      %p86 = por %p84, %p85
      %p87 = scmp.ne.s32.totalorder %s75, %s76
      %p88 = scmp.eq.s32.totalorder %s24, 1
      %p89 = por %p87, %p88
      %p91 = scmp.ne.s32.totalorder %s76, %s90
      %p92 = scmp.eq.s32.totalorder %s24, 0
      %p93 = por %p91, %p92
      %s95 = sadd.s32 %s94, 1
      %p98 = scmp.eq.s32.totalorder %s18, 1
      %p99 = scmp.ne.s32.totalorder %s94, %s96
      %p100 = scmp.eq.s32.totalorder %s18, 0
      %p101 = por %p99, %p100
      %p102 = scmp.ne.s32.totalorder %s94, %s96
      %p103 = scmp.eq.s32.totalorder %s23, 1
      %p104 = por %p102, %p103
      %p105 = scmp.ne.s32.totalorder %s96, %s97
      %p106 = scmp.eq.s32.totalorder %s23, 0
      %p107 = por %p105, %p106
      %p108 = scmp.ne.s32.totalorder %s96, %s97
      %p109 = scmp.eq.s32.totalorder %s24, 1
      %p110 = por %p108, %p109
      %p112 = scmp.ne.s32.totalorder %s97, %s111
      %p113 = scmp.eq.s32.totalorder %s24, 0
      %p114 = por %p112, %p113
      %s116 = sadd.s32 %s115, 1
      %p119 = scmp.eq.s32.totalorder %s18, 1
      %p120 = scmp.ne.s32.totalorder %s115, %s117
      %p121 = scmp.eq.s32.totalorder %s18, 0
      %p122 = por %p120, %p121
      %p123 = scmp.ne.s32.totalorder %s115, %s117
      %p124 = scmp.eq.s32.totalorder %s23, 1
      %p125 = por %p123, %p124
      %p126 = scmp.ne.s32.totalorder %s117, %s118
      %p127 = scmp.eq.s32.totalorder %s23, 0
      %p128 = por %p126, %p127
      %p129 = scmp.ne.s32.totalorder %s117, %s118
      %p130 = scmp.eq.s32.totalorder %s24, 1
      %p131 = por %p129, %p130
      %p133 = scmp.ne.s32.totalorder %s118, %s132
      %p134 = scmp.eq.s32.totalorder %s24, 0
      %p135 = por %p133, %p134
      %s137 = sadd.s32 %s136, 1
      %p140 = scmp.eq.s32.totalorder %s18, 1
      %p141 = scmp.ne.s32.totalorder %s136, %s138
      %p142 = scmp.eq.s32.totalorder %s18, 0
      %p143 = por %p141, %p142
      %p144 = scmp.ne.s32.totalorder %s136, %s138
      %p145 = scmp.eq.s32.totalorder %s23, 1
      %p146 = por %p144, %p145
      %p147 = scmp.ne.s32.totalorder %s138, %s139
      %p148 = scmp.eq.s32.totalorder %s23, 0
      %p149 = por %p147, %p148
      %p150 = scmp.ne.s32.totalorder %s138, %s139
      %p151 = scmp.eq.s32.totalorder %s24, 1
      %p152 = por %p150, %p151
      %p154 = scmp.ne.s32.totalorder %s139, %s153
      %p155 = scmp.eq.s32.totalorder %s24, 0
      %p156 = por %p154, %p155
      %s158 = sadd.s32 %s157, 1
      %p161 = scmp.eq.s32.totalorder %s18, 1
      %p162 = scmp.ne.s32.totalorder %s157, %s159
      %p163 = scmp.eq.s32.totalorder %s18, 0
      %p164 = por %p162, %p163
      %p165 = scmp.ne.s32.totalorder %s157, %s159
      %p166 = scmp.eq.s32.totalorder %s23, 1
      %p167 = por %p165, %p166
      %p168 = scmp.ne.s32.totalorder %s159, %s160
      %p169 = scmp.eq.s32.totalorder %s23, 0
      %p170 = por %p168, %p169
      %p171 = scmp.ne.s32.totalorder %s159, %s160
      %p172 = scmp.eq.s32.totalorder %s24, 1
      %p173 = por %p171, %p172
      %p175 = scmp.ne.s32.totalorder %s160, %s174
      %p176 = scmp.eq.s32.totalorder %s24, 0
      %p177 = por %p175, %p176
      %s178 = ssub.s32 %s18, %s25
      %p179 = scmp.eq.s32.totalorder %s178, 0
      %s181 = sadd.s32 %s180, 1
      %s182 = scalar_select %p179, %s180, %s181
      %p185 = pneg %p179
      %p186 = scmp.eq.s32.totalorder %s18, 1
      %p187 = por %p185, %p186
      %p188 = scmp.ne.s32.totalorder %s180, %s183
      %p189 = scmp.eq.s32.totalorder %s18, 0
      %p190 = por %p188, %p189
      %p191 = scmp.ne.s32.totalorder %s180, %s183
      %p192 = scmp.eq.s32.totalorder %s23, 1
      %p193 = por %p191, %p192
      %p194 = scmp.ne.s32.totalorder %s183, %s184
      %p195 = scmp.eq.s32.totalorder %s23, 0
      %p196 = por %p194, %p195
      %p197 = scmp.ne.s32.totalorder %s183, %s184
      %p198 = scmp.eq.s32.totalorder %s24, 1
      %p199 = por %p197, %p198
      %p201 = scmp.ne.s32.totalorder %s184, %s200
      %p202 = scmp.eq.s32.totalorder %s24, 0
      %p203 = por %p201, %p202
      %p204 = scmp.le.s32.totalorder 1, %s18
      %p205 = scmp.lt.s32.totalorder %s18, 3
      %p206 = pnand %p204, %p205
      %p207 = pneg %p206
      // Predicated region
      $region9: #{tpu_custom_call.1} parent=5 // pred_check
        _
      $region10: #{tpu_custom_call.1} parent=5 // pred_check_branch
        %209 = sbr.rel (%p206) target = $region12
      $region11: #{tpu_custom_call.1} parent=5 // pred_region
        %s210 = ssub.s32 %s18, 1
        // Predicated region
        $region13: #{tpu_custom_call.1} parent=11 // pred_check
          %p211 = pneg %p65
        $region14: #{tpu_custom_call.1} parent=11 // pred_check_branch
          %213 = sbr.rel (%p211) target = $region16
        $region15: #{tpu_custom_call.1} parent=11 // pred_region
          _
        $region16: #{tpu_custom_call.1} parent=11 // pred_fallthru
          _
        // Predicated region
        $region17: #{tpu_custom_call.1} parent=11 // pred_check
          %p214 = pneg %p86
        $region18: #{tpu_custom_call.1} parent=11 // pred_check_branch
          %216 = sbr.rel (%p214) target = $region20
        $region19: #{tpu_custom_call.1} parent=11 // pred_region
          _
        $region20: #{tpu_custom_call.1} parent=11 // pred_fallthru
          _
        // Predicated region
        $region21: #{tpu_custom_call.1} parent=11 // pred_check
          %p217 = pneg %p107
        $region22: #{tpu_custom_call.1} parent=11 // pred_check_branch
          %219 = sbr.rel (%p217) target = $region24
        $region23: #{tpu_custom_call.1} parent=11 // pred_region
          _
        $region24: #{tpu_custom_call.1} parent=11 // pred_fallthru
          _
        // Predicated region
        $region25: #{tpu_custom_call.1} parent=11 // pred_check
          %p220 = pneg %p128
        $region26: #{tpu_custom_call.1} parent=11 // pred_check_branch
          %222 = sbr.rel (%p220) target = $region28
        $region27: #{tpu_custom_call.1} parent=11 // pred_region
          _
        $region28: #{tpu_custom_call.1} parent=11 // pred_fallthru
          _
        // Predicated region
        $region29: #{tpu_custom_call.1} parent=11 // pred_check
          %p223 = pneg %p149
        $region30: #{tpu_custom_call.1} parent=11 // pred_check_branch
          %225 = sbr.rel (%p223) target = $region32
        $region31: #{tpu_custom_call.1} parent=11 // pred_region
          _
        $region32: #{tpu_custom_call.1} parent=11 // pred_fallthru
          _
        // Predicated region
        $region33: #{tpu_custom_call.1} parent=11 // pred_check
          %p226 = pneg %p170
        $region34: #{tpu_custom_call.1} parent=11 // pred_check_branch
          %228 = sbr.rel (%p226) target = $region36
        $region35: #{tpu_custom_call.1} parent=11 // pred_region
          _
        $region36: #{tpu_custom_call.1} parent=11 // pred_fallthru
          _
      $region12: #{tpu_custom_call.1} parent=5 // pred_fallthru
        _
      %p229 = scmp.lt.s32.totalorder %s18, 2
      // Predicated region
      $region37: #{tpu_custom_call.1} parent=5 // pred_check
        %p230 = pneg %p229
      $region38: #{tpu_custom_call.1} parent=5 // pred_check_branch
        %232 = sbr.rel (%p230) target = $region40
      $region39: #{tpu_custom_call.1} parent=5 // pred_region
        // Predicated region
        $region41: #{tpu_custom_call.1} parent=39 // pred_check
          %p233 = pneg %p38
        $region42: #{tpu_custom_call.1} parent=39 // pred_check_branch
          %235 = sbr.rel (%p233) target = $region44
        $region43: #{tpu_custom_call.1} parent=39 // pred_region
          %s236 = smul.u32 16, %s18
          %p237 = scmp.lt.s32.totalorder %s236, 31
          %s238 = scalar_select %p237, %s236, 31
          %s239 = smul.addr %s238, 8
          %s240 = scalar_lea.vmem %s0, %s239
          %s241 = smul.u32 16, %s18
        $region44: #{tpu_custom_call.1} parent=39 // pred_fallthru
          _
      $region40: #{tpu_custom_call.1} parent=5 // pred_fallthru
        _
      %p242 = scmp.le.s32.totalorder 1, %s18
      %p243 = scmp.lt.s32.totalorder %s18, 3
      %p244 = pnand %p242, %p243
      %p245 = pneg %p244
      // Predicated region
      $region45: #{tpu_custom_call.1} parent=5 // pred_check
        _
      $region46: #{tpu_custom_call.1} parent=5 // pred_check_branch
        %247 = sbr.rel (%p244) target = $region48
      $region47: #{tpu_custom_call.1} parent=5 // pred_region
        %s248 = ssub.s32 %s18, 1
        %s249 = smul.u32 16, %s23
        %p250 = scmp.lt.s32.totalorder %s249, 31
        %s251 = scalar_select %p250, %s249, 31
        %s252 = smul.addr %s251, 8
        %s253 = scalar_lea.vmem %s0, %s252
        %p254 = pneg %p44
        %p255 = pneg %p41
        %p256 = pneg %p65
        %p257 = pneg %p62
        %p258 = pneg %p86
        %p259 = pneg %p83
        %p260 = pneg %p107
        %p261 = pneg %p104
        %p262 = pneg %p128
        %p263 = pneg %p125
        %p264 = pneg %p149
        %p265 = pneg %p146
        %p266 = pneg %p170
        %p267 = pneg %p167
        %p268 = pneg %p196
        %p269 = pneg %p193
        %s270 = sand.u32 %s183, 1
        %s271 = scalar_lea.sflag [#allocation4], %s270
        %s272 = sand.u32 %s183, 1
        %s273 = scalar_lea.vmem [#allocation3], %s272
        %s274 = smul.u32 16, %s23
        %p275 = scmp.lt.s32.totalorder %s274, 31
        %s276 = scalar_select %p275, %s274, 31
        %s277 = smul.addr %s276, 8
        %s278 = scalar_lea.vmem %s0, %s277
        %s279 = smul.u32 16, %s23
        %v280 = vld [vmem:[%s278] sm:$0xff]
        %v281 = vld [vmem:[%s278 + $0x8] sm:$0xff]
        %v282 = vld [vmem:[%s278 + $0x10] sm:$0xff]
        %v283 = vld [vmem:[%s278 + $0x18] sm:$0xff]
        %v284 = vld [vmem:[%s278 + $0x20] sm:$0xff]
        %v285 = vld [vmem:[%s278 + $0x28] sm:$0xff]
        %v286 = vld [vmem:[%s278 + $0x30] sm:$0xff]
        %v287 = vld [vmem:[%s278 + $0x38] sm:$0xff]
        %v288 = vld [vmem:[%s278 + $0x40] sm:$0xff]
        %v289 = vld [vmem:[%s278 + $0x48] sm:$0xff]
        %v290 = vld [vmem:[%s278 + $0x50] sm:$0xff]
        %v291 = vld [vmem:[%s278 + $0x58] sm:$0xff]
        %v292 = vld [vmem:[%s278 + $0x60] sm:$0xff]
        %v293 = vld [vmem:[%s278 + $0x68] sm:$0xff]
        %v294 = vld [vmem:[%s278 + $0x70] sm:$0xff]
        %v295 = vld [vmem:[%s278 + $0x78] sm:$0xff]
        %v296 = vld [vmem:[%s1] sm:$0xff]
        %v297 = vld [vmem:[%s1 + $0x8] sm:$0xff]
        %v298 = vld [vmem:[%s1 + $0x10] sm:$0xff]
        %v299 = vld [vmem:[%s2] sm:$0x1]
        %v301 = vlaneseq
        %v302 = vshrl.u32 %v301, 7
        %v303 = vsub.s32 0, %v302
        %v304 = vrot.slane %v299, %v303
        %vm306 = vcmask 195584
        %v308 = vsel %vm306, %v280, 0
        %v311 = vsel %vm306, %v281, 0
        %v314 = vsel %vm306, %v282, 0
        %v317 = vsel %vm306, %v283, 0
        %v320 = vsel %vm306, %v284, 0
        %v323 = vsel %vm306, %v285, 0
        %v326 = vsel %vm306, %v286, 0
        %v329 = vsel %vm306, %v287, 0
        %v332 = vsel %vm306, %v288, 0
        %v335 = vsel %vm306, %v289, 0
        %v338 = vsel %vm306, %v290, 0
        %v341 = vsel %vm306, %v291, 0
        %v344 = vsel %vm306, %v292, 0
        %v347 = vsel %vm306, %v293, 0
        %v350 = vsel %vm306, %v294, 0
        %v353 = vsel %vm306, %v295, 0
        %355 = vmatprep.subr.mxu0 0.0
        %356 = vmatpush1.msra.mxu0 %v296
        %357 = vmatprep.subr.mxu0 0.0
        %358 = vmatpush1.msra.mxu0 %v297
        %359 = vmatprep.subr.mxu0 0.0
        %360 = vmatpush1.msra.mxu0 %v298
        %361 = vmatprep.subr.mxu0 0.0
        %362 = vmatpush1.msra.mxu0 0.0
        %363 = vmatprep.subr.mxu0 0.0
        %364 = vmatpush1.msra.mxu0 0.0
        %365 = vmatprep.subr.mxu0 0.0
        %366 = vmatpush1.msra.mxu0 0.0
        %367 = vmatprep.subr.mxu0 0.0
        %368 = vmatpush1.msra.mxu0 0.0
        %369 = vmatprep.subr.mxu0 0.0
        %370 = vmatpush1.msra.mxu0 0.0
        %371 = vmatprep.subr.mxu0 0.0
        %372 = vmatpush1.msra.mxu0 0.0
        %373 = vmatprep.subr.mxu0 0.0
        %374 = vmatpush1.msra.mxu0 0.0
        %375 = vmatprep.subr.mxu0 0.0
        %376 = vmatpush1.msra.mxu0 0.0
        %377 = vmatprep.subr.mxu0 0.0
        %378 = vmatpush1.msra.mxu0 0.0
        %379 = vmatprep.subr.mxu0 0.0
        %380 = vmatpush1.msra.mxu0 0.0
        %381 = vmatprep.subr.mxu0 0.0
        %382 = vmatpush1.msra.mxu0 0.0
        %383 = vmatprep.subr.mxu0 0.0
        %384 = vmatpush1.msra.mxu0 0.0
        %385 = vmatprep.subr.mxu0 0.0
        %386 = vmatpush1.msra.mxu0 0.0
        %387 = vmatprep.subr.mxu0 0.0
        %388 = vmatpush1.msra.mxu0 0.0
        %389 = vmatprep.subr.mxu0 0.0
        %390 = vmatpush1.msra.mxu0 0.0
        %391 = vmatprep.subr.mxu0 0.0
        %392 = vmatpush1.msra.mxu0 0.0
        %393 = vmatprep.subr.mxu0 0.0
        %394 = vmatpush1.msra.mxu0 0.0
        %395 = vmatprep.subr.mxu0 0.0
        %396 = vmatpush1.msra.mxu0 0.0
        %397 = vmatprep.subr.mxu0 0.0
        %398 = vmatpush1.msra.mxu0 0.0
        %399 = vmatprep.subr.mxu0 0.0
        %400 = vmatpush1.msra.mxu0 0.0
        %401 = vmatprep.subr.mxu0 0.0
        %402 = vmatpush1.msra.mxu0 0.0
        %403 = vmatprep.subr.mxu0 0.0
        %404 = vmatpush1.msra.mxu0 0.0
        %405 = vmatprep.subr.mxu0 0.0
        %406 = vmatpush1.msra.mxu0 0.0
        %407 = vmatprep.subr.mxu0 0.0
        %408 = vmatpush1.msra.mxu0 0.0
        %409 = vmatprep.subr.mxu0 0.0
        %410 = vmatpush1.msra.mxu0 0.0
        %411 = vmatprep.subr.mxu0 0.0
        %412 = vmatpush1.msra.mxu0 0.0
        %413 = vmatprep.subr.mxu0 0.0
        %414 = vmatpush1.msra.mxu0 0.0
        %415 = vmatprep.subr.mxu0 0.0
        %416 = vmatpush1.msra.mxu0 0.0
        %417 = vmatprep.subr.mxu0 0.0
        %418 = vmatpush1.msra.mxu0 0.0
        %419 = vmatprep.mubr.f32.mxu0 0.0
        %420 = vmatmul.mubr.f32.gmra.mrb[0].mxu0 %v308
        %v421 = vpop.f32.mrb[0].mxu0
        %v422 = vadd.f32 %v304, %v421
        %v423 = vpop.f32.mrb[0].mxu0
        %424 = vmatprep.mubr.f32.mxu0 0.0
        %425 = vmatmul.mubr.f32.gmra.mrb[0].mxu0 %v311
        %v426 = vpop.f32.mrb[0].mxu0
        %v427 = vadd.f32 %v304, %v426
        %v428 = vpop.f32.mrb[0].mxu0
        %429 = vmatprep.mubr.f32.mxu0 0.0
        %430 = vmatmul.mubr.f32.gmra.mrb[0].mxu0 %v314
        %v431 = vpop.f32.mrb[0].mxu0
        %v432 = vadd.f32 %v304, %v431
        %v433 = vpop.f32.mrb[0].mxu0
        %434 = vmatprep.mubr.f32.mxu0 0.0
        %435 = vmatmul.mubr.f32.gmra.mrb[0].mxu0 %v317
        %v436 = vpop.f32.mrb[0].mxu0
        %v437 = vadd.f32 %v304, %v436
        %v438 = vpop.f32.mrb[0].mxu0
        %439 = vmatprep.mubr.f32.mxu0 0.0
        %440 = vmatmul.mubr.f32.gmra.mrb[0].mxu0 %v320
        %v441 = vpop.f32.mrb[0].mxu0
        %v442 = vadd.f32 %v304, %v441
        %v443 = vpop.f32.mrb[0].mxu0
        %444 = vmatprep.mubr.f32.mxu0 0.0
        %445 = vmatmul.mubr.f32.gmra.mrb[0].mxu0 %v323
        %v446 = vpop.f32.mrb[0].mxu0
        %v447 = vadd.f32 %v304, %v446
        %v448 = vpop.f32.mrb[0].mxu0
        %449 = vmatprep.mubr.f32.mxu0 0.0
        %450 = vmatmul.mubr.f32.gmra.mrb[0].mxu0 %v326
        %v451 = vpop.f32.mrb[0].mxu0
        %v452 = vadd.f32 %v304, %v451
        %v453 = vpop.f32.mrb[0].mxu0
        %454 = vmatprep.mubr.f32.mxu0 0.0
        %455 = vmatmul.mubr.f32.gmra.mrb[0].mxu0 %v329
        %v456 = vpop.f32.mrb[0].mxu0
        %v457 = vadd.f32 %v304, %v456
        %v458 = vpop.f32.mrb[0].mxu0
        %459 = vmatprep.mubr.f32.mxu0 0.0
        %460 = vmatmul.mubr.f32.gmra.mrb[0].mxu0 %v332
        %v461 = vpop.f32.mrb[0].mxu0
        %v462 = vadd.f32 %v304, %v461
        %v463 = vpop.f32.mrb[0].mxu0
        %464 = vmatprep.mubr.f32.mxu0 0.0
        %465 = vmatmul.mubr.f32.gmra.mrb[0].mxu0 %v335
        %v466 = vpop.f32.mrb[0].mxu0
        %v467 = vadd.f32 %v304, %v466
        %v468 = vpop.f32.mrb[0].mxu0
        %469 = vmatprep.mubr.f32.mxu0 0.0
        %470 = vmatmul.mubr.f32.gmra.mrb[0].mxu0 %v338
        %v471 = vpop.f32.mrb[0].mxu0
        %v472 = vadd.f32 %v304, %v471
        %v473 = vpop.f32.mrb[0].mxu0
        %474 = vmatprep.mubr.f32.mxu0 0.0
        %475 = vmatmul.mubr.f32.gmra.mrb[0].mxu0 %v341
        %v476 = vpop.f32.mrb[0].mxu0
        %v477 = vadd.f32 %v304, %v476
        %v478 = vpop.f32.mrb[0].mxu0
        %479 = vmatprep.mubr.f32.mxu0 0.0
        %480 = vmatmul.mubr.f32.gmra.mrb[0].mxu0 %v344
        %v481 = vpop.f32.mrb[0].mxu0
        %v482 = vadd.f32 %v304, %v481
        %v483 = vpop.f32.mrb[0].mxu0
        %484 = vmatprep.mubr.f32.mxu0 0.0
        %485 = vmatmul.mubr.f32.gmra.mrb[0].mxu0 %v347
        %v486 = vpop.f32.mrb[0].mxu0
        %v487 = vadd.f32 %v304, %v486
        %v488 = vpop.f32.mrb[0].mxu0
        %489 = vmatprep.mubr.f32.mxu0 0.0
        %490 = vmatmul.mubr.f32.gmra.mrb[0].mxu0 %v350
        %v491 = vpop.f32.mrb[0].mxu0
        %v492 = vadd.f32 %v304, %v491
        %v493 = vpop.f32.mrb[0].mxu0
        %494 = vmatprep.mubr.f32.mxu0 0.0
        %495 = vmatmul.mubr.f32.gmra.mrb[0].mxu0 %v353
        %v496 = vpop.f32.mrb[0].mxu0
        %v497 = vadd.f32 %v304, %v496
        %v498 = vpop.f32.mrb[0].mxu0
        %499 = vdwg.mxu0
        %v500 = vmax.f32 %v422, 0.0
        %v501 = vmax.f32 %v427, 0.0
        %v502 = vmax.f32 %v432, 0.0
        %v503 = vmax.f32 %v437, 0.0
        %v504 = vmax.f32 %v442, 0.0
        %v505 = vmax.f32 %v447, 0.0
        %v506 = vmax.f32 %v452, 0.0
        %v507 = vmax.f32 %v457, 0.0
        %v508 = vmax.f32 %v462, 0.0
        %v509 = vmax.f32 %v467, 0.0
        %v510 = vmax.f32 %v472, 0.0
        %v511 = vmax.f32 %v477, 0.0
        %v512 = vmax.f32 %v482, 0.0
        %v513 = vmax.f32 %v487, 0.0
        %v514 = vmax.f32 %v492, 0.0
        %v515 = vmax.f32 %v497, 0.0
        %v516 = vld [vmem:[%s3] sm:$0xff]
        %v517 = vld [vmem:[%s3 + $0x8] sm:$0xff]
        %v518 = vld [vmem:[%s3 + $0x10] sm:$0xff]
        %v519 = vld [vmem:[%s3 + $0x18] sm:$0xff]
        %v520 = vld [vmem:[%s3 + $0x20] sm:$0xff]
        %v521 = vld [vmem:[%s3 + $0x28] sm:$0xff]
        %v522 = vld [vmem:[%s3 + $0x30] sm:$0xff]
        %v523 = vld [vmem:[%s3 + $0x38] sm:$0xff]
        %v524 = vld [vmem:[%s3 + $0x40] sm:$0xff]
        %v525 = vld [vmem:[%s3 + $0x48] sm:$0xff]
        %v526 = vld [vmem:[%s3 + $0x50] sm:$0xff]
        %v527 = vld [vmem:[%s3 + $0x58] sm:$0xff]
        %v528 = vld [vmem:[%s3 + $0x60] sm:$0xff]
        %v529 = vld [vmem:[%s3 + $0x68] sm:$0xff]
        %v530 = vld [vmem:[%s3 + $0x70] sm:$0xff]
        %v531 = vld [vmem:[%s3 + $0x78] sm:$0xff]
        %v532 = vld [vmem:[%s4] sm:$0x1]
        %v534 = vlaneseq
        %v535 = vshrl.u32 %v534, 7
        %v536 = vsub.s32 0, %v535
        %v537 = vrot.slane %v532, %v536
        %539 = vmatprep.subr.mxu0 0.0
        %540 = vmatpush1.msra.mxu0 %v516
        %541 = vmatprep.subr.mxu0 0.0
        %542 = vmatpush1.msra.mxu0 %v517
        %543 = vmatprep.subr.mxu0 0.0
        %544 = vmatpush1.msra.mxu0 %v518
        %545 = vmatprep.subr.mxu0 0.0
        %546 = vmatpush1.msra.mxu0 %v519
        %547 = vmatprep.subr.mxu0 0.0
        %548 = vmatpush1.msra.mxu0 %v520
        %549 = vmatprep.subr.mxu0 0.0
        %550 = vmatpush1.msra.mxu0 %v521
        %551 = vmatprep.subr.mxu0 0.0
        %552 = vmatpush1.msra.mxu0 %v522
        %553 = vmatprep.subr.mxu0 0.0
        %554 = vmatpush1.msra.mxu0 %v523
        %555 = vmatprep.subr.mxu0 0.0
        %556 = vmatpush1.msra.mxu0 %v524
        %557 = vmatprep.subr.mxu0 0.0
        %558 = vmatpush1.msra.mxu0 %v525
        %559 = vmatprep.subr.mxu0 0.0
        %560 = vmatpush1.msra.mxu0 %v526
        %561 = vmatprep.subr.mxu0 0.0
        %562 = vmatpush1.msra.mxu0 %v527
        %563 = vmatprep.subr.mxu0 0.0
        %564 = vmatpush1.msra.mxu0 %v528
        %565 = vmatprep.subr.mxu0 0.0
        %566 = vmatpush1.msra.mxu0 %v529
        %567 = vmatprep.subr.mxu0 0.0
        %568 = vmatpush1.msra.mxu0 %v530
        %569 = vmatprep.subr.mxu0 0.0
        %570 = vmatpush1.msra.mxu0 %v531
        %571 = vmatprep.subr.mxu0 0.0
        %572 = vmatpush1.msra.mxu0 0.0
        %573 = vmatprep.subr.mxu0 0.0
        %574 = vmatpush1.msra.mxu0 0.0
        %575 = vmatprep.subr.mxu0 0.0
        %576 = vmatpush1.msra.mxu0 0.0
        %577 = vmatprep.subr.mxu0 0.0
        %578 = vmatpush1.msra.mxu0 0.0
        %579 = vmatprep.subr.mxu0 0.0
        %580 = vmatpush1.msra.mxu0 0.0
        %581 = vmatprep.subr.mxu0 0.0
        %582 = vmatpush1.msra.mxu0 0.0
        %583 = vmatprep.subr.mxu0 0.0
        %584 = vmatpush1.msra.mxu0 0.0
        %585 = vmatprep.subr.mxu0 0.0
        %586 = vmatpush1.msra.mxu0 0.0
        %587 = vmatprep.subr.mxu0 0.0
        %588 = vmatpush1.msra.mxu0 0.0
        %589 = vmatprep.subr.mxu0 0.0
        %590 = vmatpush1.msra.mxu0 0.0
        %591 = vmatprep.subr.mxu0 0.0
        %592 = vmatpush1.msra.mxu0 0.0
        %593 = vmatprep.subr.mxu0 0.0
        %594 = vmatpush1.msra.mxu0 0.0
        %595 = vmatprep.subr.mxu0 0.0
        %596 = vmatpush1.msra.mxu0 0.0
        %597 = vmatprep.subr.mxu0 0.0
        %598 = vmatpush1.msra.mxu0 0.0
        %599 = vmatprep.subr.mxu0 0.0
        %600 = vmatpush1.msra.mxu0 0.0
        %601 = vmatprep.subr.mxu0 0.0
        %602 = vmatpush1.msra.mxu0 0.0
        %603 = vmatprep.mubr.f32.mxu0 0.0
        %604 = vmatmul.mubr.f32.gmra.mrb[0].mxu0 %v500
        %v605 = vpop.f32.mrb[0].mxu0
        %v606 = vadd.f32 %v537, %v605
        %v607 = vpop.f32.mrb[0].mxu0
        %608 = vmatprep.mubr.f32.mxu0 0.0
        %609 = vmatmul.mubr.f32.gmra.mrb[0].mxu0 %v501
        %v610 = vpop.f32.mrb[0].mxu0
        %v611 = vadd.f32 %v537, %v610
        %v612 = vpop.f32.mrb[0].mxu0
        %613 = vmatprep.mubr.f32.mxu0 0.0
        %614 = vmatmul.mubr.f32.gmra.mrb[0].mxu0 %v502
        %v615 = vpop.f32.mrb[0].mxu0
        %v616 = vadd.f32 %v537, %v615
        %v617 = vpop.f32.mrb[0].mxu0
        %618 = vmatprep.mubr.f32.mxu0 0.0
        %619 = vmatmul.mubr.f32.gmra.mrb[0].mxu0 %v503
        %v620 = vpop.f32.mrb[0].mxu0
        %v621 = vadd.f32 %v537, %v620
        %v622 = vpop.f32.mrb[0].mxu0
        %623 = vmatprep.mubr.f32.mxu0 0.0
        %624 = vmatmul.mubr.f32.gmra.mrb[0].mxu0 %v504
        %v625 = vpop.f32.mrb[0].mxu0
        %v626 = vadd.f32 %v537, %v625
        %v627 = vpop.f32.mrb[0].mxu0
        %628 = vmatprep.mubr.f32.mxu0 0.0
        %629 = vmatmul.mubr.f32.gmra.mrb[0].mxu0 %v505
        %v630 = vpop.f32.mrb[0].mxu0
        %v631 = vadd.f32 %v537, %v630
        %v632 = vpop.f32.mrb[0].mxu0
        %633 = vmatprep.mubr.f32.mxu0 0.0
        %634 = vmatmul.mubr.f32.gmra.mrb[0].mxu0 %v506
        %v635 = vpop.f32.mrb[0].mxu0
        %v636 = vadd.f32 %v537, %v635
        %v637 = vpop.f32.mrb[0].mxu0
        %638 = vmatprep.mubr.f32.mxu0 0.0
        %639 = vmatmul.mubr.f32.gmra.mrb[0].mxu0 %v507
        %v640 = vpop.f32.mrb[0].mxu0
        %v641 = vadd.f32 %v537, %v640
        %v642 = vpop.f32.mrb[0].mxu0
        %643 = vmatprep.mubr.f32.mxu0 0.0
        %644 = vmatmul.mubr.f32.gmra.mrb[0].mxu0 %v508
        %v645 = vpop.f32.mrb[0].mxu0
        %v646 = vadd.f32 %v537, %v645
        %v647 = vpop.f32.mrb[0].mxu0
        %648 = vmatprep.mubr.f32.mxu0 0.0
        %649 = vmatmul.mubr.f32.gmra.mrb[0].mxu0 %v509
        %v650 = vpop.f32.mrb[0].mxu0
        %v651 = vadd.f32 %v537, %v650
        %v652 = vpop.f32.mrb[0].mxu0
        %653 = vmatprep.mubr.f32.mxu0 0.0
        %654 = vmatmul.mubr.f32.gmra.mrb[0].mxu0 %v510
        %v655 = vpop.f32.mrb[0].mxu0
        %v656 = vadd.f32 %v537, %v655
        %v657 = vpop.f32.mrb[0].mxu0
        %658 = vmatprep.mubr.f32.mxu0 0.0
        %659 = vmatmul.mubr.f32.gmra.mrb[0].mxu0 %v511
        %v660 = vpop.f32.mrb[0].mxu0
        %v661 = vadd.f32 %v537, %v660
        %v662 = vpop.f32.mrb[0].mxu0
        %663 = vmatprep.mubr.f32.mxu0 0.0
        %664 = vmatmul.mubr.f32.gmra.mrb[0].mxu0 %v512
        %v665 = vpop.f32.mrb[0].mxu0
        %v666 = vadd.f32 %v537, %v665
        %v667 = vpop.f32.mrb[0].mxu0
        %668 = vmatprep.mubr.f32.mxu0 0.0
        %669 = vmatmul.mubr.f32.gmra.mrb[0].mxu0 %v513
        %v670 = vpop.f32.mrb[0].mxu0
        %v671 = vadd.f32 %v537, %v670
        %v672 = vpop.f32.mrb[0].mxu0
        %673 = vmatprep.mubr.f32.mxu0 0.0
        %674 = vmatmul.mubr.f32.gmra.mrb[0].mxu0 %v514
        %v675 = vpop.f32.mrb[0].mxu0
        %v676 = vadd.f32 %v537, %v675
        %v677 = vpop.f32.mrb[0].mxu0
        %678 = vmatprep.mubr.f32.mxu0 0.0
        %679 = vmatmul.mubr.f32.gmra.mrb[0].mxu0 %v515
        %v680 = vpop.f32.mrb[0].mxu0
        %v681 = vadd.f32 %v537, %v680
        %v682 = vpop.f32.mrb[0].mxu0
        %683 = vdwg.mxu0
        %v684 = vmax.f32 %v606, 0.0
        %v685 = vmax.f32 %v611, 0.0
        %v686 = vmax.f32 %v616, 0.0
        %v687 = vmax.f32 %v621, 0.0
        %v688 = vmax.f32 %v626, 0.0
        %v689 = vmax.f32 %v631, 0.0
        %v690 = vmax.f32 %v636, 0.0
        %v691 = vmax.f32 %v641, 0.0
        %v692 = vmax.f32 %v646, 0.0
        %v693 = vmax.f32 %v651, 0.0
        %v694 = vmax.f32 %v656, 0.0
        %v695 = vmax.f32 %v661, 0.0
        %v696 = vmax.f32 %v666, 0.0
        %v697 = vmax.f32 %v671, 0.0
        %v698 = vmax.f32 %v676, 0.0
        %v699 = vmax.f32 %v681, 0.0
        %v700 = vld [vmem:[%s5] sm:$0x1]
        %v701 = vld [vmem:[#allocation2] sm:$0x1]
        %v703 = vlaneseq
        %v704 = vshrl.u32 %v703, 7
        %v705 = vsub.s32 0, %v704
        %v706 = vrot.slane %v700, %v705
        %v708 = vmul.f32 %v684, %v706
        %v709 = vmul.f32 %v685, %v706
        %v710 = vmul.f32 %v686, %v706
        %v711 = vmul.f32 %v687, %v706
        %v712 = vmul.f32 %v688, %v706
        %v713 = vmul.f32 %v689, %v706
        %v714 = vmul.f32 %v690, %v706
        %v715 = vmul.f32 %v691, %v706
        %v716 = vmul.f32 %v692, %v706
        %v717 = vmul.f32 %v693, %v706
        %v718 = vmul.f32 %v694, %v706
        %v719 = vmul.f32 %v695, %v706
        %v720 = vmul.f32 %v696, %v706
        %v721 = vmul.f32 %v697, %v706
        %v722 = vmul.f32 %v698, %v706
        %v723 = vmul.f32 %v699, %v706
        %724 = vadd.xlane.f32.xlu0 %v708
        %v725 = vpop.xlane.xlu0 %724
        %726 = vadd.xlane.f32.xlu0 %v709
        %v727 = vpop.xlane.xlu0 %726
        %728 = vadd.xlane.f32.xlu0 %v710
        %v729 = vpop.xlane.xlu0 %728
        %730 = vadd.xlane.f32.xlu0 %v711
        %v731 = vpop.xlane.xlu0 %730
        %732 = vadd.xlane.f32.xlu0 %v712
        %v733 = vpop.xlane.xlu0 %732
        %734 = vadd.xlane.f32.xlu0 %v713
        %v735 = vpop.xlane.xlu0 %734
        %736 = vadd.xlane.f32.xlu0 %v714
        %v737 = vpop.xlane.xlu0 %736
        %738 = vadd.xlane.f32.xlu0 %v715
        %v739 = vpop.xlane.xlu0 %738
        %740 = vadd.xlane.f32.xlu0 %v716
        %v741 = vpop.xlane.xlu0 %740
        %742 = vadd.xlane.f32.xlu0 %v717
        %v743 = vpop.xlane.xlu0 %742
        %744 = vadd.xlane.f32.xlu0 %v718
        %v745 = vpop.xlane.xlu0 %744
        %746 = vadd.xlane.f32.xlu0 %v719
        %v747 = vpop.xlane.xlu0 %746
        %748 = vadd.xlane.f32.xlu0 %v720
        %v749 = vpop.xlane.xlu0 %748
        %750 = vadd.xlane.f32.xlu0 %v721
        %v751 = vpop.xlane.xlu0 %750
        %752 = vadd.xlane.f32.xlu0 %v722
        %v753 = vpop.xlane.xlu0 %752
        %754 = vadd.xlane.f32.xlu0 %v723
        %v755 = vpop.xlane.xlu0 %754
        %757 = vset.pattern.permute.xlu0 0
        %758 = vperm.xlu0 %757, %v701
        %v759 = vpop.permute.xlu0 %758
        %v761 = vlaneseq
        %v762 = vshrl.u32 %v761, 7
        %v763 = vsub.s32 0, %v762
        %v764 = vrot.slane %v759, %v763
        %v765 = vadd.f32 %v725, %v764
        %v766 = vadd.f32 %v727, %v764
        %v767 = vadd.f32 %v729, %v764
        %v768 = vadd.f32 %v731, %v764
        %v769 = vadd.f32 %v733, %v764
        %v770 = vadd.f32 %v735, %v764
        %v771 = vadd.f32 %v737, %v764
        %v772 = vadd.f32 %v739, %v764
        %v773 = vadd.f32 %v741, %v764
        %v774 = vadd.f32 %v743, %v764
        %v775 = vadd.f32 %v745, %v764
        %v776 = vadd.f32 %v747, %v764
        %v777 = vadd.f32 %v749, %v764
        %v778 = vadd.f32 %v751, %v764
        %v779 = vadd.f32 %v753, %v764
        %v780 = vadd.f32 %v755, %v764
        %v797 = vlaneseq
        %v798 = vand.u32 %v797, 127
        %v799 = vlaneseq
        %v800 = vshrl.u32 %v799, 7
        %v801 = vsub.s32 %v798, %v800
        %v802 = vrot.slane %v765, %v801
        %v803 = vadd.s32 %v798, 4294967288
        %v804 = vlaneseq
        %v805 = vshrl.u32 %v804, 7
        %v806 = vsub.s32 %v803, %v805
        %v807 = vrot.slane %v766, %v806
        %vm808 = vcmask 130112
        %v809 = vsel %vm808, %v807, %v802
        %v810 = vadd.s32 %v798, 4294967280
        %v811 = vlaneseq
        %v812 = vshrl.u32 %v811, 7
        %v813 = vsub.s32 %v810, %v812
        %v814 = vrot.slane %v767, %v813
        %vm815 = vcmask 195712
        %v816 = vsel %vm815, %v814, %v809
        %v817 = vadd.s32 %v798, 4294967272
        %v818 = vlaneseq
        %v819 = vshrl.u32 %v818, 7
        %v820 = vsub.s32 %v817, %v819
        %v821 = vrot.slane %v768, %v820
        %vm822 = vcmask 261312
        %v823 = vsel %vm822, %v821, %v816
        %v824 = vadd.s32 %v798, 4294967264
        %v825 = vlaneseq
        %v826 = vshrl.u32 %v825, 7
        %v827 = vsub.s32 %v824, %v826
        %v828 = vrot.slane %v769, %v827
        %vm829 = vcmask 326912
        %v830 = vsel %vm829, %v828, %v823
        %v831 = vadd.s32 %v798, 4294967256
        %v832 = vlaneseq
        %v833 = vshrl.u32 %v832, 7
        %v834 = vsub.s32 %v831, %v833
        %v835 = vrot.slane %v770, %v834
        %vm836 = vcmask 392512
        %v837 = vsel %vm836, %v835, %v830
        %v838 = vadd.s32 %v798, 4294967248
        %v839 = vlaneseq
        %v840 = vshrl.u32 %v839, 7
        %v841 = vsub.s32 %v838, %v840
        %v842 = vrot.slane %v771, %v841
        %vm843 = vcmask 458112
        %v844 = vsel %vm843, %v842, %v837
        %v845 = vadd.s32 %v798, 4294967240
        %v846 = vlaneseq
        %v847 = vshrl.u32 %v846, 7
        %v848 = vsub.s32 %v845, %v847
        %v849 = vrot.slane %v772, %v848
        %vm850 = vcmask 523712
        %v851 = vsel %vm850, %v849, %v844
        %v852 = vadd.s32 %v798, 4294967232
        %v853 = vlaneseq
        %v854 = vshrl.u32 %v853, 7
        %v855 = vsub.s32 %v852, %v854
        %v856 = vrot.slane %v773, %v855
        %vm857 = vcmask 589312
        %v858 = vsel %vm857, %v856, %v851
        %v859 = vadd.s32 %v798, 4294967224
        %v860 = vlaneseq
        %v861 = vshrl.u32 %v860, 7
        %v862 = vsub.s32 %v859, %v861
        %v863 = vrot.slane %v774, %v862
        %vm864 = vcmask 654912
        %v865 = vsel %vm864, %v863, %v858
        %v866 = vadd.s32 %v798, 4294967216
        %v867 = vlaneseq
        %v868 = vshrl.u32 %v867, 7
        %v869 = vsub.s32 %v866, %v868
        %v870 = vrot.slane %v775, %v869
        %vm871 = vcmask 720512
        %v872 = vsel %vm871, %v870, %v865
        %v873 = vadd.s32 %v798, 4294967208
        %v874 = vlaneseq
        %v875 = vshrl.u32 %v874, 7
        %v876 = vsub.s32 %v873, %v875
        %v877 = vrot.slane %v776, %v876
        %vm878 = vcmask 786112
        %v879 = vsel %vm878, %v877, %v872
        %v880 = vadd.s32 %v798, 4294967200
        %v881 = vlaneseq
        %v882 = vshrl.u32 %v881, 7
        %v883 = vsub.s32 %v880, %v882
        %v884 = vrot.slane %v777, %v883
        %vm885 = vcmask 851712
        %v886 = vsel %vm885, %v884, %v879
        %v887 = vadd.s32 %v798, 4294967192
        %v888 = vlaneseq
        %v889 = vshrl.u32 %v888, 7
        %v890 = vsub.s32 %v887, %v889
        %v891 = vrot.slane %v778, %v890
        %vm892 = vcmask 917312
        %v893 = vsel %vm892, %v891, %v886
        %v894 = vadd.s32 %v798, 4294967184
        %v895 = vlaneseq
        %v896 = vshrl.u32 %v895, 7
        %v897 = vsub.s32 %v894, %v896
        %v898 = vrot.slane %v779, %v897
        %vm899 = vcmask 982912
        %v900 = vsel %vm899, %v898, %v893
        %v901 = vadd.s32 %v798, 4294967176
        %v902 = vlaneseq
        %v903 = vshrl.u32 %v902, 7
        %v904 = vsub.s32 %v901, %v903
        %v905 = vrot.slane %v780, %v904
        %vm906 = vcmask 1048512
        %v907 = vsel %vm906, %v905, %v900
        %909 = vst [vmem:[%s273] sm:$0x1] %v907
        %s910 = sand.u32 %s183, 1
        %s911 = scalar_lea.sflag [#allocation4], %s910
        %s912 = sand.u32 %s183, 1
        %s913 = scalar_lea.vmem [#allocation3], %s912
        // Predicated region
        $region49: #{tpu_custom_call.1} parent=47 // pred_check
          %p914 = pneg %p193
        $region50: #{tpu_custom_call.1} parent=47 // pred_check_branch
          %916 = sbr.rel (%p914) target = $region52
        $region51: #{tpu_custom_call.1} parent=47 // pred_region
          %s918 = ssub.s32 16, 16
          %919 = vsyncadd %s911, %s918
          %s920 = smul.addr %s23, 16
          %s921 = scalar_lea.hbm %s7, %s920
          %s923 = sshll.u32 %s913, 4
          %s924 = int_to_ptr.vmem [resolvable:$true] %s923
          %926 = dma.vmem_to_hbm [thread:$0]  %s924, 16, %s921, %s911
        $region52: #{tpu_custom_call.1} parent=47 // pred_fallthru
          _
      $region48: #{tpu_custom_call.1} parent=5 // pred_fallthru
        _
      %p927 = scmp.le.s32.totalorder 2, %s18
      // Predicated region
      $region53: #{tpu_custom_call.1} parent=5 // pred_check
        %p928 = pneg %p927
      $region54: #{tpu_custom_call.1} parent=5 // pred_check_branch
        %930 = sbr.rel (%p928) target = $region56
      $region55: #{tpu_custom_call.1} parent=5 // pred_region
        %s931 = ssub.s32 %s18, 2
        // Predicated region
        $region57: #{tpu_custom_call.1} parent=55 // pred_check
          %p932 = pneg %p199
        $region58: #{tpu_custom_call.1} parent=55 // pred_check_branch
          %934 = sbr.rel (%p932) target = $region60
        $region59: #{tpu_custom_call.1} parent=55 // pred_region
          %s935 = sand.u32 %s184, 1
          %s936 = scalar_lea.sflag [#allocation4], %s935
          %s937 = sand.u32 %s184, 1
          %s938 = scalar_lea.vmem [#allocation3], %s937
          %939 = dma.done %s936, 16
        $region60: #{tpu_custom_call.1} parent=55 // pred_fallthru
          _
      $region56: #{tpu_custom_call.1} parent=5 // pred_fallthru
        _
    $region6: #{tpu_custom_call.1} parent=1 // loop_footer
      %s22 = sadd.s32 1, %s18
    $region7: #{tpu_custom_call.1} parent=1 // loop_footer_branch
      %17 = sbr.rel target = $region3
    $region8: #{tpu_custom_call.1} parent=1 // loop_exit
      _
    %940 = vsyncpa [#allocation4], 1
    %s941 = scalar_lea.sflag [#allocation4], 1
    %942 = vsyncpa %s941, 1

</llo_original>
